<compile_context>
chip_gen: v5e
topology: v5e:2x2
jax: 0.10.0
libtpu: 0.0.40
codegen_flags: <defaults>
</compile_context>

<pallas_src>
import jax
import jax.numpy as jnp
from jax.experimental import pallas as pl
from jax.experimental.pallas import tpu as pltpu


def _make_sensation_kernel(filter_sizes, *, seq_len, seq_pad, emb_dim, num_filters,
                           batch_block):
    """Builds the kernel body for a fixed (static) configuration."""
    S, Sp, E, F, TB = seq_len, seq_pad, emb_dim, num_filters, batch_block
    n_conv = len(filter_sizes)
    max_k = max(filter_sizes)
    N = TB * Sp                                     # rows fed to the fused matmul

    # Column offset of filter i's tap-0 block inside the fused RHS / matmul output.
    col_off, c = [], 0
    for k in filter_sizes:
        col_off.append(c)
        c += k * F

    def kernel(tok_ref,                             # SMEM (B*Sp,) int32 (scalar prefetch)
               emb_ref,                             # VMEM (V, E) f32, resident across grid
               w_ref,                               # VMEM (E, Cpad) bf16 fused conv weights
               b_ref,                               # VMEM (1, n_conv*F) f32 conv biases
               wo_ref,                              # VMEM (1, n_conv*F) f32 Linear weight
               bo_ref,                              # VMEM (1, 1) f32 Linear bias
               o_ref,                               # VMEM (TB, 1) f32 output block
               x_vmem):                             # VMEM (N, E) f32 gathered embeddings
        g = pl.program_id(0)
        base = g * N

        # ---- embedding gather: VMEM-resident table, per-row dynamic loads -----------
        # No HBM DMAs here (the table was pipelined into VMEM once by BlockSpec).
        # TODO(synk): for very large TB*Sp, chunk this with lax.fori_loop to bound
        #             trace/compile size, and consider a bf16 table once packed-dtype
        #             dynamic sublane slicing is confirmed on the target Mosaic version.
        for r in range(N):
            tid = tok_ref[base + r]
            x_vmem[pl.ds(r, 1), :] = emb_ref[pl.ds(tid, 1), :]

        # ---- one fused MXU matmul over every filter and every tap --------------------
        x = x_vmem[...].astype(jnp.bfloat16)                         # (N, E)
        y = jnp.dot(x, w_ref[...],
                    preferred_element_type=jnp.float32)              # (N, Cpad)

        b_all = b_ref[...]                                           # (1, n_conv*F)
        wo = wo_ref[...]                                             # (1, n_conv*F)
        t_idx = jax.lax.broadcasted_iota(jnp.int32, (TB, Sp, F), 1)

        # tau = 0 contribution for every filter (small (N, F) slices of y).
        accs = [y[:, col_off[i]:col_off[i] + F] for i in range(n_conv)]

        # Running rolled copy: after the tau-th roll, cur[r] == y[(r + tau) mod N].
        # Only 2 live (N, Cpad) tensors at any time (y and cur); wrapped / cross-batch
        # rows only ever land in positions that are masked before the max-pool.
        cur = y
        for tau in range(1, max_k):
            cur = pltpu.roll(cur, N - 1, axis=0)                     # shift by -1 (XLU)
            for i, k in enumerate(filter_sizes):
                if tau < k:
                    off = col_off[i] + tau * F
                    accs[i] = accs[i] + cur[:, off:off + F]

        # ---- bias + ReLU + masked max-pool + folded Linear(n_conv*F -> 1) ------------
        logit = jnp.zeros((TB, 1), jnp.float32) + bo_ref[...]        # (TB, 1)
        for i, k in enumerate(filter_sizes):
            a = accs[i] + b_all[:, i * F:(i + 1) * F]                # (N, F)
            a = jnp.maximum(a, 0.0)                                  # ReLU (>= 0)
            a = a.reshape(TB, Sp, F)                                 # Sp % 8 == 0 -> no relayout
            # Only t in [0, S - k] are valid conv outputs; masking invalid/padded rows
            # to 0 is safe because the ReLU output is >= 0.
            a = jnp.where(t_idx < (S - k + 1), a, 0.0)
            pooled = jnp.max(a, axis=1)                              # (TB, F)
            logit = logit + jnp.sum(pooled * wo[:, i * F:(i + 1) * F],
                                    axis=1, keepdims=True)

        # sigmoid; approximate reciprocal runs on the EUP slot (free).
        o_ref[...] = pl.reciprocal(1.0 + jnp.exp(-logit), approx=True)

    return kernel


def _pick_batch_tile(B, S_pad):
    """Choose TB with B % TB == 0 and (TB == B or TB % 8 == 0); aim for TB*S_pad ~ 128."""
    target = max(1, pl.cdiv(128, S_pad))
    if B <= target:
        return B
    cands = [t for t in range(8, B + 1, 8) if B % t == 0 and t <= max(target, 8)]
    return max(cands) if cands else B


def sensation_cnn_forward(input_batch, params, filter_sizes):
    """SensationCNN.forward: embedding -> Conv1d/ReLU/max-pool per filter size
    -> concat -> Linear -> sigmoid, all fused into a single Pallas kernel."""
    filter_sizes = tuple(int(k) for k in filter_sizes)
    emb = params["embedding"].astype(jnp.float32)                   # (V, E)
    V, E = emb.shape
    B, S = input_batch.shape
    F = params["conv_b"][0].shape[-1]
    n_conv = len(filter_sizes)
    nF = n_conv * F
    max_k = max(filter_sizes)
    assert S >= max_k, "sequence shorter than largest filter"

    # Pad the sequence to a multiple of 8 so in-kernel reshapes stay layout-clean.
    S_pad = ((S + 7) // 8) * 8
    TB = _pick_batch_tile(B, S_pad)                                  # TB == B or TB % 8 == 0
    G = B // TB

    # Fused conv RHS: column (off_i + tau*F + f) holds filter i, tap tau, out-channel f.
    w_blocks = []
    for i, k in enumerate(filter_sizes):
        w = params["conv_w"][i].astype(jnp.float32)                  # (k, E, F)
        w_blocks.append(jnp.transpose(w, (1, 0, 2)).reshape(E, k * F))
    w_big = jnp.concatenate(w_blocks, axis=1)                        # (E, C)
    C = w_big.shape[1]
    Cpad = ((C + 127) // 128) * 128                                  # lane-dense MXU output
    if Cpad > C:
        w_big = jnp.pad(w_big, ((0, 0), (0, Cpad - C)))
    w_big = w_big.astype(jnp.bfloat16)                               # (E, Cpad) bf16

    b_all = jnp.concatenate(
        [params["conv_b"][i].reshape(1, F) for i in range(n_conv)],
        axis=1).astype(jnp.float32)                                  # (1, nF)
    out_w = params["out_w"].reshape(1, nF).astype(jnp.float32)       # torch Linear weight
    out_b = params["out_b"].reshape(1, 1).astype(jnp.float32)

    # Flat 1-D int32 token ids for SMEM scalar prefetch (no 2-D SMEM padding blow-up).
    tok = input_batch.astype(jnp.int32)
    if S_pad > S:
        tok = jnp.pad(tok, ((0, 0), (0, S_pad - S)))                 # pad with PAD id 0
    tok_flat = tok.reshape(B * S_pad)

    kernel = _make_sensation_kernel(
        filter_sizes, seq_len=S, seq_pad=S_pad, emb_dim=E, num_filters=F,
        batch_block=TB)

    # VMEM budget: resident table + double-buffered weights/consts + gather scratch.
    # TODO(synk): for vocabularies too large for VMEM (esp. v7x's 64 MiB), fall back to
    #             an HBM table with a chunked, cross-grid-step double-buffered gather.
    vmem_bytes = 2 * (V * E * 4 + E * Cpad * 2 + 4 * nF * 4) + TB * S_pad * E * 4
    vmem_bytes = int(min(max(vmem_bytes + (2 << 20), 32 << 20), 60 << 20))

    out = pl.pallas_call(
        kernel,
        out_shape=jax.ShapeDtypeStruct((B, 1), jnp.float32),
        grid_spec=pltpu.PrefetchScalarGridSpec(
            num_scalar_prefetch=1,                                   # token ids -> SMEM
            grid=(G,),
            in_specs=[
                pl.BlockSpec((V, E), lambda g, tok: (0, 0)),         # emb table, VMEM-resident
                pl.BlockSpec((E, Cpad), lambda g, tok: (0, 0)),      # fused conv weights
                pl.BlockSpec((1, nF), lambda g, tok: (0, 0)),        # conv biases
                pl.BlockSpec((1, nF), lambda g, tok: (0, 0)),        # Linear weight
                pl.BlockSpec((1, 1), lambda g, tok: (0, 0)),         # Linear bias
            ],
            out_specs=pl.BlockSpec((TB, 1), lambda g, tok: (g, 0)),
            scratch_shapes=[
                pltpu.VMEM((TB * S_pad, E), jnp.float32),            # gathered embeddings
            ],
        ),
        compiler_params=pltpu.CompilerParams(
            dimension_semantics=("parallel",),                       # shard batch tiles (v7x)
            vmem_limit_bytes=vmem_bytes,
        ),
    )(tok_flat, emb, w_big, b_all, out_w, out_b)
    return out[:, 0]                                                 # torch .squeeze()


if __name__ == "__main__":
    key = jax.random.PRNGKey(0)

    # Small shapes consistent with the module's forward.
    V, E, F, B, S = 50, 32, 16, 2, 8           # vocab, emb_size, num_filters, batch, seq
    filter_sizes = (2, 3)                      # opts['filter_sizes'] = "2,3"
    PAD_idx = 0

    keys = jax.random.split(key, 8)

    # nn.Embedding(padding_idx=PAD_idx): zero the PAD row.
    emb = jax.random.normal(keys[0], (V, E), jnp.float32) * 0.1
    emb = emb.at[PAD_idx].set(0.0)

    # Conv1d weights: torch layout (out_ch=F, in_ch=E, k) -> stored as (k, E, F).
    conv_w, conv_b = [], []
    for i, k in enumerate(filter_sizes):
        w_pt = jax.random.normal(keys[2 + 2 * i], (F, E, k), jnp.float32) * 0.05
        conv_w.append(jnp.transpose(w_pt, (2, 1, 0)))
        conv_b.append(jax.random.normal(keys[3 + 2 * i], (1, F), jnp.float32) * 0.05)

    # Linear(num_filters * len(filter_sizes) -> 1), torch weight layout (1, nF).
    out_w = jax.random.normal(keys[6], (1, F * len(filter_sizes)), jnp.float32) * 0.05
    out_b = jnp.zeros((1, 1), jnp.float32)

    tokens = jax.random.randint(keys[1], (B, S), 0, V)

    params = dict(embedding=emb, conv_w=conv_w, conv_b=conv_b,
                  out_w=out_w, out_b=out_b)

    prob = jax.block_until_ready(sensation_cnn_forward(tokens, params, filter_sizes))

    # Pure-JAX (f32) reference of the PyTorch forward for sanity.
    x_ref = jnp.take(emb, tokens, axis=0)                            # (B, S, E)
    feats = []
    for i, k in enumerate(filter_sizes):
        L = S - k + 1
        acc = jnp.zeros((B, L, F), jnp.float32)
        for tau in range(k):
            acc = acc + jnp.einsum("ble,ef->blf",
                                   x_ref[:, tau:tau + L, :], conv_w[i][tau])
        acc = jax.nn.relu(acc + conv_b[i][:, None, :])
        feats.append(jnp.max(acc, axis=1))
    feat_ref = jnp.concatenate(feats, axis=1)                        # (B, nF)
    ref = jax.nn.sigmoid(feat_ref @ out_w[0] + out_b[0, 0])          # (B,)

    assert prob.shape == (B,), prob.shape
    # bf16 matmul + approximate-reciprocal sigmoid tolerance.
    assert jnp.allclose(prob, ref, atol=5e-3), (prob, ref)
    print("KERNEL_OK")
</pallas_src>

<mosaic_0001>
module attributes {stable_mosaic.version = 11 : i64} {
  func.func @kernel(%arg0: i32, %arg1: memref<16xi32, #tpu.memory_space<smem>>, %arg2: memref<50x32xf32, #tpu.memory_space<vmem>>, %arg3: memref<32x128xbf16, #tpu.memory_space<vmem>>, %arg4: memref<1x32xf32, #tpu.memory_space<vmem>>, %arg5: memref<1x32xf32, #tpu.memory_space<vmem>>, %arg6: memref<1x1xf32, #tpu.memory_space<vmem>>, %arg7: memref<2x1xf32, #tpu.memory_space<vmem>>, %arg8: memref<16x32xf32, #tpu.memory_space<vmem>>) attributes {dimension_semantics = [#tpu.dimension_semantics<parallel>], iteration_bounds = array<i64: 1>, scalar_prefetch = 1 : i64, scratch_operands = 1 : i64, tpu.core_type = #tpu.core_type<tc>, window_params = [{pipeline_mode = #tpu.pipeline_mode<synchronous>, transform_indices = @transform_0, window_bounds = array<i64: 50, 32>}, {pipeline_mode = #tpu.pipeline_mode<synchronous>, transform_indices = @transform_1, window_bounds = array<i64: 32, 128>}, {pipeline_mode = #tpu.pipeline_mode<synchronous>, transform_indices = @transform_2, window_bounds = array<i64: 1, 32>}, {pipeline_mode = #tpu.pipeline_mode<synchronous>, transform_indices = @transform_3, window_bounds = array<i64: 1, 32>}, {pipeline_mode = #tpu.pipeline_mode<synchronous>, transform_indices = @transform_4, window_bounds = array<i64: 1, 1>}, {transform_indices = @transform_5, window_bounds = array<i64: 2, 1>}]} {
    %c16_i32 = arith.constant 16 : i32
    %0 = arith.muli %arg0, %c16_i32 : i32
    %c0_i32 = arith.constant 0 : i32
    %1 = arith.addi %0, %c0_i32 : i32
    %2 = arith.index_cast %1 : i32 to index
    %3 = memref.load %arg1[%2] : memref<16xi32, #tpu.memory_space<smem>>
    %4 = arith.index_cast %3 : i32 to index
    %c0 = arith.constant 0 : index
    %5 = vector.load %arg2[%4, %c0] : memref<50x32xf32, #tpu.memory_space<vmem>>, vector<1x32xf32>
    %c0_0 = arith.constant 0 : index
    %c0_1 = arith.constant 0 : index
    %6 = vector.load %arg8[%c0_0, %c0_1] : memref<16x32xf32, #tpu.memory_space<vmem>>, vector<1x32xf32>
    tpu.vector_store %arg8[%c0_0, %c0_1], %5 {strides = array<i32>} : memref<16x32xf32, #tpu.memory_space<vmem>>, vector<1x32xf32>,
    %c1_i32 = arith.constant 1 : i32
    %7 = arith.addi %0, %c1_i32 : i32
    %8 = arith.index_cast %7 : i32 to index
    %9 = memref.load %arg1[%8] : memref<16xi32, #tpu.memory_space<smem>>
    %10 = arith.index_cast %9 : i32 to index
    %c0_2 = arith.constant 0 : index
    %11 = vector.load %arg2[%10, %c0_2] : memref<50x32xf32, #tpu.memory_space<vmem>>, vector<1x32xf32>
    %c1 = arith.constant 1 : index
    %c0_3 = arith.constant 0 : index
    %12 = vector.load %arg8[%c1, %c0_3] : memref<16x32xf32, #tpu.memory_space<vmem>>, vector<1x32xf32>
    tpu.vector_store %arg8[%c1, %c0_3], %11 {strides = array<i32>} : memref<16x32xf32, #tpu.memory_space<vmem>>, vector<1x32xf32>,
    %c2_i32 = arith.constant 2 : i32
    %13 = arith.addi %0, %c2_i32 : i32
    %14 = arith.index_cast %13 : i32 to index
    %15 = memref.load %arg1[%14] : memref<16xi32, #tpu.memory_space<smem>>
    %16 = arith.index_cast %15 : i32 to index
    %c0_4 = arith.constant 0 : index
    %17 = vector.load %arg2[%16, %c0_4] : memref<50x32xf32, #tpu.memory_space<vmem>>, vector<1x32xf32>
    %c2 = arith.constant 2 : index
    %c0_5 = arith.constant 0 : index
    %18 = vector.load %arg8[%c2, %c0_5] : memref<16x32xf32, #tpu.memory_space<vmem>>, vector<1x32xf32>
    tpu.vector_store %arg8[%c2, %c0_5], %17 {strides = array<i32>} : memref<16x32xf32, #tpu.memory_space<vmem>>, vector<1x32xf32>,
    %c3_i32 = arith.constant 3 : i32
    %19 = arith.addi %0, %c3_i32 : i32
    %20 = arith.index_cast %19 : i32 to index
    %21 = memref.load %arg1[%20] : memref<16xi32, #tpu.memory_space<smem>>
    %22 = arith.index_cast %21 : i32 to index
    %c0_6 = arith.constant 0 : index
    %23 = vector.load %arg2[%22, %c0_6] : memref<50x32xf32, #tpu.memory_space<vmem>>, vector<1x32xf32>
    %c3 = arith.constant 3 : index
    %c0_7 = arith.constant 0 : index
    %24 = vector.load %arg8[%c3, %c0_7] : memref<16x32xf32, #tpu.memory_space<vmem>>, vector<1x32xf32>
    tpu.vector_store %arg8[%c3, %c0_7], %23 {strides = array<i32>} : memref<16x32xf32, #tpu.memory_space<vmem>>, vector<1x32xf32>,
    %c4_i32 = arith.constant 4 : i32
    %25 = arith.addi %0, %c4_i32 : i32
    %26 = arith.index_cast %25 : i32 to index
    %27 = memref.load %arg1[%26] : memref<16xi32, #tpu.memory_space<smem>>
    %28 = arith.index_cast %27 : i32 to index
    %c0_8 = arith.constant 0 : index
    %29 = vector.load %arg2[%28, %c0_8] : memref<50x32xf32, #tpu.memory_space<vmem>>, vector<1x32xf32>
    %c4 = arith.constant 4 : index
    %c0_9 = arith.constant 0 : index
    %30 = vector.load %arg8[%c4, %c0_9] : memref<16x32xf32, #tpu.memory_space<vmem>>, vector<1x32xf32>
    tpu.vector_store %arg8[%c4, %c0_9], %29 {strides = array<i32>} : memref<16x32xf32, #tpu.memory_space<vmem>>, vector<1x32xf32>,
    %c5_i32 = arith.constant 5 : i32
    %31 = arith.addi %0, %c5_i32 : i32
    %32 = arith.index_cast %31 : i32 to index
    %33 = memref.load %arg1[%32] : memref<16xi32, #tpu.memory_space<smem>>
    %34 = arith.index_cast %33 : i32 to index
    %c0_10 = arith.constant 0 : index
    %35 = vector.load %arg2[%34, %c0_10] : memref<50x32xf32, #tpu.memory_space<vmem>>, vector<1x32xf32>
    %c5 = arith.constant 5 : index
    %c0_11 = arith.constant 0 : index
    %36 = vector.load %arg8[%c5, %c0_11] : memref<16x32xf32, #tpu.memory_space<vmem>>, vector<1x32xf32>
    tpu.vector_store %arg8[%c5, %c0_11], %35 {strides = array<i32>} : memref<16x32xf32, #tpu.memory_space<vmem>>, vector<1x32xf32>,
    %c6_i32 = arith.constant 6 : i32
    %37 = arith.addi %0, %c6_i32 : i32
    %38 = arith.index_cast %37 : i32 to index
    %39 = memref.load %arg1[%38] : memref<16xi32, #tpu.memory_space<smem>>
    %40 = arith.index_cast %39 : i32 to index
    %c0_12 = arith.constant 0 : index
    %41 = vector.load %arg2[%40, %c0_12] : memref<50x32xf32, #tpu.memory_space<vmem>>, vector<1x32xf32>
    %c6 = arith.constant 6 : index
    %c0_13 = arith.constant 0 : index
    %42 = vector.load %arg8[%c6, %c0_13] : memref<16x32xf32, #tpu.memory_space<vmem>>, vector<1x32xf32>
    tpu.vector_store %arg8[%c6, %c0_13], %41 {strides = array<i32>} : memref<16x32xf32, #tpu.memory_space<vmem>>, vector<1x32xf32>,
    %c7_i32 = arith.constant 7 : i32
    %43 = arith.addi %0, %c7_i32 : i32
    %44 = arith.index_cast %43 : i32 to index
    %45 = memref.load %arg1[%44] : memref<16xi32, #tpu.memory_space<smem>>
    %46 = arith.index_cast %45 : i32 to index
    %c0_14 = arith.constant 0 : index
    %47 = vector.load %arg2[%46, %c0_14] : memref<50x32xf32, #tpu.memory_space<vmem>>, vector<1x32xf32>
    %c7 = arith.constant 7 : index
    %c0_15 = arith.constant 0 : index
    %48 = vector.load %arg8[%c7, %c0_15] : memref<16x32xf32, #tpu.memory_space<vmem>>, vector<1x32xf32>
    tpu.vector_store %arg8[%c7, %c0_15], %47 {strides = array<i32>} : memref<16x32xf32, #tpu.memory_space<vmem>>, vector<1x32xf32>,
    %c8_i32 = arith.constant 8 : i32
    %49 = arith.addi %0, %c8_i32 : i32
    %50 = arith.index_cast %49 : i32 to index
    %51 = memref.load %arg1[%50] : memref<16xi32, #tpu.memory_space<smem>>
    %52 = arith.index_cast %51 : i32 to index
    %c0_16 = arith.constant 0 : index
    %53 = vector.load %arg2[%52, %c0_16] : memref<50x32xf32, #tpu.memory_space<vmem>>, vector<1x32xf32>
    %c8 = arith.constant 8 : index
    %c0_17 = arith.constant 0 : index
    %54 = vector.load %arg8[%c8, %c0_17] : memref<16x32xf32, #tpu.memory_space<vmem>>, vector<1x32xf32>
    tpu.vector_store %arg8[%c8, %c0_17], %53 {strides = array<i32>} : memref<16x32xf32, #tpu.memory_space<vmem>>, vector<1x32xf32>,
    %c9_i32 = arith.constant 9 : i32
    %55 = arith.addi %0, %c9_i32 : i32
    %56 = arith.index_cast %55 : i32 to index
    %57 = memref.load %arg1[%56] : memref<16xi32, #tpu.memory_space<smem>>
    %58 = arith.index_cast %57 : i32 to index
    %c0_18 = arith.constant 0 : index
    %59 = vector.load %arg2[%58, %c0_18] : memref<50x32xf32, #tpu.memory_space<vmem>>, vector<1x32xf32>
    %c9 = arith.constant 9 : index
    %c0_19 = arith.constant 0 : index
    %60 = vector.load %arg8[%c9, %c0_19] : memref<16x32xf32, #tpu.memory_space<vmem>>, vector<1x32xf32>
    tpu.vector_store %arg8[%c9, %c0_19], %59 {strides = array<i32>} : memref<16x32xf32, #tpu.memory_space<vmem>>, vector<1x32xf32>,
    %c10_i32 = arith.constant 10 : i32
    %61 = arith.addi %0, %c10_i32 : i32
    %62 = arith.index_cast %61 : i32 to index
    %63 = memref.load %arg1[%62] : memref<16xi32, #tpu.memory_space<smem>>
    %64 = arith.index_cast %63 : i32 to index
    %c0_20 = arith.constant 0 : index
    %65 = vector.load %arg2[%64, %c0_20] : memref<50x32xf32, #tpu.memory_space<vmem>>, vector<1x32xf32>
    %c10 = arith.constant 10 : index
    %c0_21 = arith.constant 0 : index
    %66 = vector.load %arg8[%c10, %c0_21] : memref<16x32xf32, #tpu.memory_space<vmem>>, vector<1x32xf32>
    tpu.vector_store %arg8[%c10, %c0_21], %65 {strides = array<i32>} : memref<16x32xf32, #tpu.memory_space<vmem>>, vector<1x32xf32>,
    %c11_i32 = arith.constant 11 : i32
    %67 = arith.addi %0, %c11_i32 : i32
    %68 = arith.index_cast %67 : i32 to index
    %69 = memref.load %arg1[%68] : memref<16xi32, #tpu.memory_space<smem>>
    %70 = arith.index_cast %69 : i32 to index
    %c0_22 = arith.constant 0 : index
    %71 = vector.load %arg2[%70, %c0_22] : memref<50x32xf32, #tpu.memory_space<vmem>>, vector<1x32xf32>
    %c11 = arith.constant 11 : index
    %c0_23 = arith.constant 0 : index
    %72 = vector.load %arg8[%c11, %c0_23] : memref<16x32xf32, #tpu.memory_space<vmem>>, vector<1x32xf32>
    tpu.vector_store %arg8[%c11, %c0_23], %71 {strides = array<i32>} : memref<16x32xf32, #tpu.memory_space<vmem>>, vector<1x32xf32>,
    %c12_i32 = arith.constant 12 : i32
    %73 = arith.addi %0, %c12_i32 : i32
    %74 = arith.index_cast %73 : i32 to index
    %75 = memref.load %arg1[%74] : memref<16xi32, #tpu.memory_space<smem>>
    %76 = arith.index_cast %75 : i32 to index
    %c0_24 = arith.constant 0 : index
    %77 = vector.load %arg2[%76, %c0_24] : memref<50x32xf32, #tpu.memory_space<vmem>>, vector<1x32xf32>
    %c12 = arith.constant 12 : index
    %c0_25 = arith.constant 0 : index
    %78 = vector.load %arg8[%c12, %c0_25] : memref<16x32xf32, #tpu.memory_space<vmem>>, vector<1x32xf32>
    tpu.vector_store %arg8[%c12, %c0_25], %77 {strides = array<i32>} : memref<16x32xf32, #tpu.memory_space<vmem>>, vector<1x32xf32>,
    %c13_i32 = arith.constant 13 : i32
    %79 = arith.addi %0, %c13_i32 : i32
    %80 = arith.index_cast %79 : i32 to index
    %81 = memref.load %arg1[%80] : memref<16xi32, #tpu.memory_space<smem>>
    %82 = arith.index_cast %81 : i32 to index
    %c0_26 = arith.constant 0 : index
    %83 = vector.load %arg2[%82, %c0_26] : memref<50x32xf32, #tpu.memory_space<vmem>>, vector<1x32xf32>
    %c13 = arith.constant 13 : index
    %c0_27 = arith.constant 0 : index
    %84 = vector.load %arg8[%c13, %c0_27] : memref<16x32xf32, #tpu.memory_space<vmem>>, vector<1x32xf32>
    tpu.vector_store %arg8[%c13, %c0_27], %83 {strides = array<i32>} : memref<16x32xf32, #tpu.memory_space<vmem>>, vector<1x32xf32>,
    %c14_i32 = arith.constant 14 : i32
    %85 = arith.addi %0, %c14_i32 : i32
    %86 = arith.index_cast %85 : i32 to index
    %87 = memref.load %arg1[%86] : memref<16xi32, #tpu.memory_space<smem>>
    %88 = arith.index_cast %87 : i32 to index
    %c0_28 = arith.constant 0 : index
    %89 = vector.load %arg2[%88, %c0_28] : memref<50x32xf32, #tpu.memory_space<vmem>>, vector<1x32xf32>
    %c14 = arith.constant 14 : index
    %c0_29 = arith.constant 0 : index
    %90 = vector.load %arg8[%c14, %c0_29] : memref<16x32xf32, #tpu.memory_space<vmem>>, vector<1x32xf32>
    tpu.vector_store %arg8[%c14, %c0_29], %89 {strides = array<i32>} : memref<16x32xf32, #tpu.memory_space<vmem>>, vector<1x32xf32>,
    %c15_i32 = arith.constant 15 : i32
    %91 = arith.addi %0, %c15_i32 : i32
    %92 = arith.index_cast %91 : i32 to index
    %93 = memref.load %arg1[%92] : memref<16xi32, #tpu.memory_space<smem>>
    %94 = arith.index_cast %93 : i32 to index
    %c0_30 = arith.constant 0 : index
    %95 = vector.load %arg2[%94, %c0_30] : memref<50x32xf32, #tpu.memory_space<vmem>>, vector<1x32xf32>
    %c15 = arith.constant 15 : index
    %c0_31 = arith.constant 0 : index
    %96 = vector.load %arg8[%c15, %c0_31] : memref<16x32xf32, #tpu.memory_space<vmem>>, vector<1x32xf32>
    tpu.vector_store %arg8[%c15, %c0_31], %95 {strides = array<i32>} : memref<16x32xf32, #tpu.memory_space<vmem>>, vector<1x32xf32>,
    %c0_32 = arith.constant 0 : index
    %c0_33 = arith.constant 0 : index
    %97 = vector.load %arg8[%c0_32, %c0_33] : memref<16x32xf32, #tpu.memory_space<vmem>>, vector<16x32xf32>
    %98 = arith.truncf %97 : vector<16x32xf32> to vector<16x32xbf16>
    %c0_34 = arith.constant 0 : index
    %c0_35 = arith.constant 0 : index
    %99 = vector.load %arg3[%c0_34, %c0_35] : memref<32x128xbf16, #tpu.memory_space<vmem>>, vector<32x128xbf16>
    %cst = arith.constant dense<0.000000e+00> : vector<16x128xf32>
    %100 = tpu.matmul %98, %99, %cst {dimension_numbers = #tpu.dot_dimension_numbers<[1], [0], [0], [1], [0, 0, 1, 1], [], []>} : vector<16x32xbf16>, vector<32x128xbf16>, vector<16x128xf32> -> vector<16x128xf32>
    %c0_36 = arith.constant 0 : index
    %c0_37 = arith.constant 0 : index
    %101 = vector.load %arg4[%c0_36, %c0_37] : memref<1x32xf32, #tpu.memory_space<vmem>>, vector<1x32xf32>
    %c0_38 = arith.constant 0 : index
    %c0_39 = arith.constant 0 : index
    %102 = vector.load %arg5[%c0_38, %c0_39] : memref<1x32xf32, #tpu.memory_space<vmem>>, vector<1x32xf32>
    %103 = tpu.iota {dimensions = array<i32: 1>} : vector<2x8x16xi32>
    %104 = vector.extract_strided_slice %100 {offsets = [0, 0], sizes = [16, 16], strides = [1, 1]} : vector<16x128xf32> to vector<16x16xf32>
    %105 = vector.extract_strided_slice %100 {offsets = [0, 32], sizes = [16, 16], strides = [1, 1]} : vector<16x128xf32> to vector<16x16xf32>
    %c15_i32_40 = arith.constant 15 : i32
    %106 = tpu.dynamic_rotate %100 by %c15_i32_40 dim 0 : vector<16x128xf32>, i32 -> vector<16x128xf32>
    %107 = vector.extract_strided_slice %106 {offsets = [0, 16], sizes = [16, 16], strides = [1, 1]} : vector<16x128xf32> to vector<16x16xf32>
    %108 = arith.addf %104, %107 : vector<16x16xf32>
    %109 = vector.extract_strided_slice %106 {offsets = [0, 48], sizes = [16, 16], strides = [1, 1]} : vector<16x128xf32> to vector<16x16xf32>
    %110 = arith.addf %105, %109 : vector<16x16xf32>
    %c15_i32_41 = arith.constant 15 : i32
    %111 = tpu.dynamic_rotate %106 by %c15_i32_41 dim 0 : vector<16x128xf32>, i32 -> vector<16x128xf32>
    %112 = vector.extract_strided_slice %111 {offsets = [0, 64], sizes = [16, 16], strides = [1, 1]} : vector<16x128xf32> to vector<16x16xf32>
    %113 = arith.addf %110, %112 : vector<16x16xf32>
    %cst_42 = arith.constant 0.000000e+00 : f32
    %114 = vector.broadcast %cst_42 : f32 to vector<2x1xf32>
    %c0_43 = arith.constant 0 : index
    %c0_44 = arith.constant 0 : index
    %115 = vector.load %arg6[%c0_43, %c0_44] : memref<1x1xf32, #tpu.memory_space<vmem>>, vector<1x1xf32>
    %116 = vector.broadcast %115 : vector<1x1xf32> to vector<2x1xf32>
    %117 = arith.addf %114, %116 : vector<2x1xf32>
    %118 = vector.extract_strided_slice %101 {offsets = [0, 0], sizes = [1, 16], strides = [1, 1]} : vector<1x32xf32> to vector<1x16xf32>
    %119 = vector.broadcast %118 : vector<1x16xf32> to vector<16x16xf32>
    %120 = arith.addf %108, %119 : vector<16x16xf32>
    %cst_45 = arith.constant 0.000000e+00 : f32
    %121 = vector.broadcast %cst_45 : f32 to vector<16x16xf32>
    %122 = arith.maximumf %120, %121 : vector<16x16xf32>
    %123 = vector.shape_cast %122 : vector<16x16xf32> to vector<2x8x16xf32>
    %c7_i32_46 = arith.constant 7 : i32
    %124 = vector.broadcast %c7_i32_46 : i32 to vector<2x8x16xi32>
    %125 = arith.cmpi slt, %103, %124 : vector<2x8x16xi32>
    %cst_47 = arith.constant 0.000000e+00 : f32
    %126 = vector.broadcast %cst_47 : f32 to vector<2x8x16xf32>
    %127 = arith.select %125, %123, %126 : vector<2x8x16xi1>, vector<2x8x16xf32>
    %cst_48 = arith.constant dense<0xFF800000> : vector<2x16xf32>
    %128 = vector.multi_reduction <maximumf>, %127, %cst_48 [1] : vector<2x8x16xf32> to vector<2x16xf32>
    %129 = vector.extract_strided_slice %102 {offsets = [0, 0], sizes = [1, 16], strides = [1, 1]} : vector<1x32xf32> to vector<1x16xf32>
    %130 = vector.broadcast %129 : vector<1x16xf32> to vector<2x16xf32>
    %131 = arith.mulf %128, %130 : vector<2x16xf32>
    %cst_49 = arith.constant dense<0.000000e+00> : vector<2xf32>
    %132 = vector.multi_reduction <add>, %131, %cst_49 [1] : vector<2x16xf32> to vector<2xf32>
    %133 = vector.shape_cast %132 : vector<2xf32> to vector<2x1xf32>
    %134 = arith.addf %117, %133 : vector<2x1xf32>
    %135 = vector.extract_strided_slice %101 {offsets = [0, 16], sizes = [1, 16], strides = [1, 1]} : vector<1x32xf32> to vector<1x16xf32>
    %136 = vector.broadcast %135 : vector<1x16xf32> to vector<16x16xf32>
    %137 = arith.addf %113, %136 : vector<16x16xf32>
    %cst_50 = arith.constant 0.000000e+00 : f32
    %138 = vector.broadcast %cst_50 : f32 to vector<16x16xf32>
    %139 = arith.maximumf %137, %138 : vector<16x16xf32>
    %140 = vector.shape_cast %139 : vector<16x16xf32> to vector<2x8x16xf32>
    %c6_i32_51 = arith.constant 6 : i32
    %141 = vector.broadcast %c6_i32_51 : i32 to vector<2x8x16xi32>
    %142 = arith.cmpi slt, %103, %141 : vector<2x8x16xi32>
    %cst_52 = arith.constant 0.000000e+00 : f32
    %143 = vector.broadcast %cst_52 : f32 to vector<2x8x16xf32>
    %144 = arith.select %142, %140, %143 : vector<2x8x16xi1>, vector<2x8x16xf32>
    %cst_53 = arith.constant dense<0xFF800000> : vector<2x16xf32>
    %145 = vector.multi_reduction <maximumf>, %144, %cst_53 [1] : vector<2x8x16xf32> to vector<2x16xf32>
    %146 = vector.extract_strided_slice %102 {offsets = [0, 16], sizes = [1, 16], strides = [1, 1]} : vector<1x32xf32> to vector<1x16xf32>
    %147 = vector.broadcast %146 : vector<1x16xf32> to vector<2x16xf32>
    %148 = arith.mulf %145, %147 : vector<2x16xf32>
    %cst_54 = arith.constant dense<0.000000e+00> : vector<2xf32>
    %149 = vector.multi_reduction <add>, %148, %cst_54 [1] : vector<2x16xf32> to vector<2xf32>
    %150 = vector.shape_cast %149 : vector<2xf32> to vector<2x1xf32>
    %151 = arith.addf %134, %150 : vector<2x1xf32>
    %cst_55 = arith.constant 0.000000e+00 : f32
    %152 = vector.broadcast %cst_55 : f32 to vector<2x1xf32>
    %153 = arith.subf %152, %151 : vector<2x1xf32>
    %154 = math.exp %153 : vector<2x1xf32>
    %cst_56 = arith.constant 1.000000e+00 : f32
    %155 = vector.broadcast %cst_56 : f32 to vector<2x1xf32>
    %156 = arith.addf %155, %154 : vector<2x1xf32>
    %157 = tpu.reciprocal %156 {approx = true} : vector<2x1xf32> -> vector<2x1xf32>
    %c0_57 = arith.constant 0 : index
    %c0_58 = arith.constant 0 : index
    %158 = vector.load %arg7[%c0_57, %c0_58] : memref<2x1xf32, #tpu.memory_space<vmem>>, vector<2x1xf32>
    tpu.vector_store %arg7[%c0_57, %c0_58], %157 {strides = array<i32>} : memref<2x1xf32, #tpu.memory_space<vmem>>, vector<2x1xf32>,
    return
  }
  func.func @transform_0(%arg0: i32, %arg1: memref<16xi32, #tpu.memory_space<smem>>) -> (i32, i32) {
    %c0_i32 = arith.constant 0 : i32
    %c0_i32_0 = arith.constant 0 : i32
    %c0_i32_1 = arith.constant 0 : i32
    return %c0_i32, %c0_i32_0 : i32, i32
  }
  func.func @transform_1(%arg0: i32, %arg1: memref<16xi32, #tpu.memory_space<smem>>) -> (i32, i32) {
    %c0_i32 = arith.constant 0 : i32
    %c0_i32_0 = arith.constant 0 : i32
    %c0_i32_1 = arith.constant 0 : i32
    return %c0_i32, %c0_i32_0 : i32, i32
  }
  func.func @transform_2(%arg0: i32, %arg1: memref<16xi32, #tpu.memory_space<smem>>) -> (i32, i32) {
    %c0_i32 = arith.constant 0 : i32
    %c0_i32_0 = arith.constant 0 : i32
    %c0_i32_1 = arith.constant 0 : i32
    return %c0_i32, %c0_i32_0 : i32, i32
  }
  func.func @transform_3(%arg0: i32, %arg1: memref<16xi32, #tpu.memory_space<smem>>) -> (i32, i32) {
    %c0_i32 = arith.constant 0 : i32
    %c0_i32_0 = arith.constant 0 : i32
    %c0_i32_1 = arith.constant 0 : i32
    return %c0_i32, %c0_i32_0 : i32, i32
  }
  func.func @transform_4(%arg0: i32, %arg1: memref<16xi32, #tpu.memory_space<smem>>) -> (i32, i32) {
    %c0_i32 = arith.constant 0 : i32
    %c0_i32_0 = arith.constant 0 : i32
    %c0_i32_1 = arith.constant 0 : i32
    return %c0_i32, %c0_i32_0 : i32, i32
  }
  func.func @transform_5(%arg0: i32, %arg1: memref<16xi32, #tpu.memory_space<smem>>) -> (i32, i32) {
    %c0_i32 = arith.constant 0 : i32
    %c0_i32_0 = arith.constant 0 : i32
    return %arg0, %c0_i32 : i32, i32
  }
}

</mosaic_0001>

<llo_original>
// kernel: tpu_custom_call.1
$region0: #{tpu_custom_call.1}
  #allocation0 [shape = 'u32[]', space=smem, size = 0x4, offset = 0x4, fixed_abs, tag = 'smem constant byte address 0x4 - core index']
  #allocation1 [shape = 'u32[72,128]{1,0:T(1,128)}', space=vmem, size = 0x9000, scoped, tag = 'internal scratch']
  #allocation2 [shape = 'f32[16,32]{1,0:T(8,128)}', space=vmem, size = 0x2000, scoped, tag = 'scratch operand']
  #allocation3 [shape = 's32[1]{0}', space=sflag, size = 0x4, scoped, tag = 'scoped memory for tpu_custom_call.1']
  #allocation4 [shape = 'u8[512]{0}', space=smem, size = 0x200, scoped, tag = 'prefetched SMEM operand 0']
  #allocation5 [shape = 'f32[1,1]{1,0:T(1,128)S(1)}', space=vmem, size = 0x200, scoped, tag = 'scoped memory for tpu_custom_call.1']
  %s0 = inlined_call_operand.vmem [shape: s32[16], index: 0, kind: input, shape index: {}]
  %s1 = inlined_call_operand.vmem [shape: f32[50,32], index: 1, kind: input, shape index: {}]
  %s2 = inlined_call_operand.vmem [shape: bf16[32,128], index: 2, kind: input, shape index: {}]
  %s3 = inlined_call_operand.vmem [shape: f32[1,32], index: 3, kind: input, shape index: {}]
  %s4 = inlined_call_operand.vmem [shape: f32[1,32], index: 4, kind: input, shape index: {}]
  %s5 = inlined_call_operand.<no memory space> [shape: f32[1,1], index: 5, kind: input, shape index: {}]
  %s6 = inlined_call_operand.vmem [shape: f32[2,1], index: 6, kind: output, shape index: {}]
  %s7 = sld [smem:[#allocation0]]
  $region30: #{tpu_custom_call.1} parent=0
    _
  %s9 = ssub.s32 1, %s7
  %s10 = scalar_select 0, %s9, %s7
  %s12 = sshll.u32 %s0, 4
  %s13 = int_to_ptr.vmem [resolvable:$true] %s12
  %15 = dma.vmem_to_smem %s13, 16, [#allocation4], [#allocation3]
  %v16 = vstv %s5
  %17 = vst [vmem:[#allocation5] sm:$0x1] %v16
  %19 = dma.done [#allocation3], 16
  %20 = sfence
  // Predicated region
  $region2: #{tpu_custom_call.1} parent=0 // pred_check
    _
  $region3: #{tpu_custom_call.1} parent=0 // pred_check_branch
    %22 = sbr.rel (0) target = $region5
  $region4: #{tpu_custom_call.1} parent=0 // pred_region
    _
  $region5: #{tpu_custom_call.1} parent=0 // pred_fallthru
    _
  // Predicated region
  $region6: #{tpu_custom_call.1} parent=0 // pred_check
    _
  $region7: #{tpu_custom_call.1} parent=0 // pred_check_branch
    %24 = sbr.rel (0) target = $region9
  $region8: #{tpu_custom_call.1} parent=0 // pred_region
    _
  $region9: #{tpu_custom_call.1} parent=0 // pred_fallthru
    _
  // Predicated region
  $region10: #{tpu_custom_call.1} parent=0 // pred_check
    _
  $region11: #{tpu_custom_call.1} parent=0 // pred_check_branch
    %26 = sbr.rel (0) target = $region13
  $region12: #{tpu_custom_call.1} parent=0 // pred_region
    _
  $region13: #{tpu_custom_call.1} parent=0 // pred_fallthru
    _
  // Predicated region
  $region14: #{tpu_custom_call.1} parent=0 // pred_check
    _
  $region15: #{tpu_custom_call.1} parent=0 // pred_check_branch
    %28 = sbr.rel (0) target = $region17
  $region16: #{tpu_custom_call.1} parent=0 // pred_region
    _
  $region17: #{tpu_custom_call.1} parent=0 // pred_fallthru
    _
  // Predicated region
  $region18: #{tpu_custom_call.1} parent=0 // pred_check
    _
  $region19: #{tpu_custom_call.1} parent=0 // pred_check_branch
    %30 = sbr.rel (0) target = $region21
  $region20: #{tpu_custom_call.1} parent=0 // pred_region
    _
  $region21: #{tpu_custom_call.1} parent=0 // pred_fallthru
    _
  %s32 = smul.u32 0, 16
  %s33 = sld [smem:[#allocation4 + %s32]]
  %s34 = scalar_lea.vmem %s1, %s33
  %v35 = vld [vmem:[%s34] sm:$0x1]
  %vm36 = vcmask 253952
  %37 = vst.msk [vmem:[#allocation2] sm:$0x1] %vm36, %v35
  %s38 = sadd.s32 %s32, 1
  %s39 = sld [smem:[#allocation4 + %s38]]
  %s40 = scalar_lea.vmem %s1, %s39
  %v41 = vld [vmem:[%s40] sm:$0x1]
  %42 = vst.msk [vmem:[#allocation2 + $0x1] sm:$0x1] %vm36, %v41
  %s43 = sadd.s32 %s32, 2
  %s44 = sld [smem:[#allocation4 + %s43]]
  %s45 = scalar_lea.vmem %s1, %s44
  %v46 = vld [vmem:[%s45] sm:$0x1]
  %47 = vst.msk [vmem:[#allocation2 + $0x2] sm:$0x1] %vm36, %v46
  %s48 = sadd.s32 %s32, 3
  %s49 = sld [smem:[#allocation4 + %s48]]
  %s50 = scalar_lea.vmem %s1, %s49
  %v51 = vld [vmem:[%s50] sm:$0x1]
  %52 = vst.msk [vmem:[#allocation2 + $0x3] sm:$0x1] %vm36, %v51
  %s53 = sadd.s32 %s32, 4
  %s54 = sld [smem:[#allocation4 + %s53]]
  %s55 = scalar_lea.vmem %s1, %s54
  %v56 = vld [vmem:[%s55] sm:$0x1]
  %57 = vst.msk [vmem:[#allocation2 + $0x4] sm:$0x1] %vm36, %v56
  %s58 = sadd.s32 %s32, 5
  %s59 = sld [smem:[#allocation4 + %s58]]
  %s60 = scalar_lea.vmem %s1, %s59
  %v61 = vld [vmem:[%s60] sm:$0x1]
  %62 = vst.msk [vmem:[#allocation2 + $0x5] sm:$0x1] %vm36, %v61
  %s63 = sadd.s32 %s32, 6
  %s64 = sld [smem:[#allocation4 + %s63]]
  %s65 = scalar_lea.vmem %s1, %s64
  %v66 = vld [vmem:[%s65] sm:$0x1]
  %67 = vst.msk [vmem:[#allocation2 + $0x6] sm:$0x1] %vm36, %v66
  %s68 = sadd.s32 %s32, 7
  %s69 = sld [smem:[#allocation4 + %s68]]
  %s70 = scalar_lea.vmem %s1, %s69
  %v71 = vld [vmem:[%s70] sm:$0x1]
  %72 = vst.msk [vmem:[#allocation2 + $0x7] sm:$0x1] %vm36, %v71
  %s73 = sadd.s32 %s32, 8
  %s74 = sld [smem:[#allocation4 + %s73]]
  %s75 = scalar_lea.vmem %s1, %s74
  %v76 = vld [vmem:[%s75] sm:$0x1]
  %77 = vst.msk [vmem:[#allocation2 + $0x8] sm:$0x1] %vm36, %v76
  %s78 = sadd.s32 %s32, 9
  %s79 = sld [smem:[#allocation4 + %s78]]
  %s80 = scalar_lea.vmem %s1, %s79
  %v81 = vld [vmem:[%s80] sm:$0x1]
  %82 = vst.msk [vmem:[#allocation2 + $0x9] sm:$0x1] %vm36, %v81
  %s83 = sadd.s32 %s32, 10
  %s84 = sld [smem:[#allocation4 + %s83]]
  %s85 = scalar_lea.vmem %s1, %s84
  %v86 = vld [vmem:[%s85] sm:$0x1]
  %87 = vst.msk [vmem:[#allocation2 + $0xa] sm:$0x1] %vm36, %v86
  %s88 = sadd.s32 %s32, 11
  %s89 = sld [smem:[#allocation4 + %s88]]
  %s90 = scalar_lea.vmem %s1, %s89
  %v91 = vld [vmem:[%s90] sm:$0x1]
  %92 = vst.msk [vmem:[#allocation2 + $0xb] sm:$0x1] %vm36, %v91
  %s93 = sadd.s32 %s32, 12
  %s94 = sld [smem:[#allocation4 + %s93]]
  %s95 = scalar_lea.vmem %s1, %s94
  %v96 = vld [vmem:[%s95] sm:$0x1]
  %97 = vst.msk [vmem:[#allocation2 + $0xc] sm:$0x1] %vm36, %v96
  %s98 = sadd.s32 %s32, 13
  %s99 = sld [smem:[#allocation4 + %s98]]
  %s100 = scalar_lea.vmem %s1, %s99
  %v101 = vld [vmem:[%s100] sm:$0x1]
  %102 = vst.msk [vmem:[#allocation2 + $0xd] sm:$0x1] %vm36, %v101
  %s103 = sadd.s32 %s32, 14
  %s104 = sld [smem:[#allocation4 + %s103]]
  %s105 = scalar_lea.vmem %s1, %s104
  %v106 = vld [vmem:[%s105] sm:$0x1]
  %107 = vst.msk [vmem:[#allocation2 + $0xe] sm:$0x1] %vm36, %v106
  %s108 = sadd.s32 %s32, 15
  %s109 = sld [smem:[#allocation4 + %s108]]
  %s110 = scalar_lea.vmem %s1, %s109
  %v111 = vld [vmem:[%s110] sm:$0x1]
  %112 = vst.msk [vmem:[#allocation2 + $0xf] sm:$0x1] %vm36, %v111
  %v113 = vld [vmem:[#allocation2] sm:$0xff]
  %v114 = vld [vmem:[#allocation2 + $0x8] sm:$0xff]
  %v115 = vpack.c.bf16 %v114, %v113
  %v116 = vld [vmem:[%s2] sm:$0xf]
  %v117 = vld [vmem:[%s2 + $0x4] sm:$0xf]
  %v118 = vld [vmem:[%s2 + $0x8] sm:$0xf]
  %v119 = vld [vmem:[%s2 + $0xc] sm:$0xf]
  %v124 = vunpack.c.l.b16 %v116
  %v125 = vunpack.c.l.b16 %v117
  %v126 = vunpack.c.l.b16 %v118
  %v127 = vunpack.c.l.b16 %v119
  %v128 = vpack.c.b16 %v125, %v124
  %v129 = vpack.c.b16 %v127, %v126
  %vm132 = vcmask 261120
  %v134 = vsel %vm132, %v115, 0
  %136 = vmatpush.bf16.msra.mxu0 0
  %137 = vmatpush.bf16.msra.mxu0 0
  %138 = vmatpush.bf16.msra.mxu0 0
  %139 = vmatpush.bf16.msra.mxu0 0
  %140 = vmatpush.bf16.msra.mxu0 0
  %141 = vmatpush.bf16.msra.mxu0 0
  %142 = vmatpush.bf16.msra.mxu0 %v129
  %143 = vmatpush.bf16.msra.mxu0 %v128
  %144 = vmatmul.bf16.gmra.mxu0 %v134
  %v145 = vpop.f32.mrf.mxu0
  %v146 = vadd.f32 0.0, %v145
  %v147 = vpop.f32.mrf.mxu0
  %v148 = vadd.f32 0.0, %v147
  %149 = vdwg.mxu0
  %v150 = vld [vmem:[%s3] sm:$0x1]
  %v151 = vld [vmem:[%s4] sm:$0x1]
  %v152 = vlaneseq
  %v153 = vshrl.u32 %v152, 7
  %v154 = vrot.slane %v146, 1
  %v155 = vrot.slane %v148, 1
  %vm156 = vcmp.lt.s32.totalorder %v153, 7
  %v157 = vsel %vm156, %v154, %v155
  %v158 = vsel %vm156, %v155, %v154
  %161 = vrot.lane.b32.xlu0 %v157, 112
  %v162 = vpop.permute.xlu0 %161
  %163 = vrot.lane.b32.xlu0 %v158, 112
  %v164 = vpop.permute.xlu0 %163
  %v167 = vadd.f32 %v146, %v162
  %v168 = vadd.f32 %v148, %v164
  %v169 = vrot.slane %v157, 1
  %v170 = vrot.slane %v158, 1
  %v171 = vsel %vm156, %v169, %v170
  %v172 = vsel %vm156, %v170, %v169
  %175 = vrot.lane.b32.xlu0 %v171, 96
  %v176 = vpop.permute.xlu0 %175
  %177 = vrot.lane.b32.xlu0 %v172, 96
  %v178 = vpop.permute.xlu0 %177
  %v181 = vadd.f32 %v167, %v176
  %v182 = vadd.f32 %v168, %v178
  %v183 = vld [vmem:[#allocation5] sm:$0x1]
  %v185 = vperm.slane %v183, 0
  %v187 = vadd.f32 %v185, 0.0
  %v189 = vperm.slane %v150, 0
  %v191 = vadd.f32 %v167, %v189
  %v192 = vadd.f32 %v168, %v189
  %v193 = vmax.f32 %v191, 0.0
  %v194 = vmax.f32 %v192, 0.0
  %v195 = vsel %vm156, %v193, 0.0
  %v196 = vsel %vm156, %v194, 0.0
  %vm197 = vcmask 130048
  %v198 = vsel %vm197, %v195, -inf
  %v199 = vrot.slane %v198, 4
  %v200 = vmax.f32 %v198, %v199
  %v201 = vrot.slane %v200, 2
  %v202 = vmax.f32 %v200, %v201
  %v203 = vrot.slane %v202, 1
  %v204 = vmax.f32 %v202, %v203
  %v205 = vsel %vm197, %v196, -inf
  %v206 = vrot.slane %v205, 4
  %v207 = vmax.f32 %v205, %v206
  %v208 = vrot.slane %v207, 2
  %v209 = vmax.f32 %v207, %v208
  %v210 = vrot.slane %v209, 1
  %v211 = vmax.f32 %v209, %v210
  %v213 = vperm.slane %v151, 0
  %v215 = vmul.f32 %v204, %v213
  %v216 = vmul.f32 %v211, %v213
  %v219 = vrot.slane %v216, 7
  %vm220 = vcmask 1041409
  %v221 = vsel %vm220, %v219, %v215
  %vm223 = vcmask 123904
  %v224 = vsel %vm223, %v221, 0.0
  %225 = vadd.xlane.f32.xlu0 %v224
  %v226 = vpop.xlane.xlu0 %225
  %v227 = vadd.f32 %v187, %v226
  %228 = vrot.lane.b32.xlu0 %v189, 16
  %v229 = vpop.permute.xlu0 %228
  %v231 = vadd.f32 %v181, %v229
  %v232 = vadd.f32 %v182, %v229
  %v233 = vmax.f32 %v231, 0.0
  %v234 = vmax.f32 %v232, 0.0
  %vm235 = vcmp.lt.s32.totalorder %v153, 6
  %v236 = vsel %vm235, %v233, 0.0
  %v237 = vsel %vm235, %v234, 0.0
  %vm238 = vcmask 392448
  %v239 = vsel %vm238, %v236, -inf
  %v240 = vrot.slane %v239, 4
  %v241 = vmax.f32 %v239, %v240
  %v242 = vrot.slane %v241, 2
  %v243 = vmax.f32 %v241, %v242
  %v244 = vrot.slane %v243, 1
  %v245 = vmax.f32 %v243, %v244
  %v246 = vsel %vm238, %v237, -inf
  %v247 = vrot.slane %v246, 4
  %v248 = vmax.f32 %v246, %v247
  %v249 = vrot.slane %v248, 2
  %v250 = vmax.f32 %v248, %v249
  %v251 = vrot.slane %v250, 1
  %v252 = vmax.f32 %v250, %v251
  %253 = vrot.lane.b32.xlu0 %v213, 16
  %v254 = vpop.permute.xlu0 %253
  %v256 = vmul.f32 %v245, %v254
  %v257 = vmul.f32 %v252, %v254
  %v260 = vrot.slane %v257, 7
  %v261 = vsel %vm220, %v260, %v256
  %262 = vrot.lane.b32.xlu0 %v261, 96
  %v263 = vpop.permute.xlu0 %262
  %v265 = vsel %vm223, %v263, 0.0
  %266 = vadd.xlane.f32.xlu0 %v265
  %v267 = vpop.xlane.xlu0 %266
  %v268 = vadd.f32 %v227, %v267
  %v269 = vsub.f32 0.0, %v268
  %v270 = vmul.f32 %v269, 1.442695
  %v271 = vpow.pop %v270
  %v272 = vadd.f32 %v271, 1.0
  %v273 = vrcp.pop %v272
  %vm274 = vcmask 1024
  %275 = vst.msk [vmem:[%s6] sm:$0x3] %vm274, %v273
  // Predicated region
  $region22: #{tpu_custom_call.1} parent=0 // pred_check
    _
  $region23: #{tpu_custom_call.1} parent=0 // pred_check_branch
    %277 = sbr.rel (0) target = $region25
  $region24: #{tpu_custom_call.1} parent=0 // pred_region
    _
  $region25: #{tpu_custom_call.1} parent=0 // pred_fallthru
    _
  // Predicated region
  $region26: #{tpu_custom_call.1} parent=0 // pred_check
    _
  $region27: #{tpu_custom_call.1} parent=0 // pred_check_branch
    %279 = sbr.rel (0) target = $region29
  $region28: #{tpu_custom_call.1} parent=0 // pred_region
    _
  $region29: #{tpu_custom_call.1} parent=0 // pred_fallthru
    _

</llo_original>
